<compile_context>
chip_gen: v7x
topology: tpu7x:2x2x1
jax: 0.10.0
libtpu: 0.0.40
codegen_flags: <defaults>
</compile_context>

<pallas_src>
import jax
import jax.numpy as jnp
from jax.experimental import pallas as pl
from jax.experimental.pallas import tpu as pltpu

LANE = 128  # pad num_nodes (fc3 contraction output) up to this for the MXU


def _round_up(x, m):
    return ((x + m - 1) // m) * m


def _pick_tile_b(b_pad, max_tile=2048, split_threshold=512):
    """Largest multiple-of-8 tile that divides b_pad (<= max_tile); prefers
    >= 2 grid steps once the batch is big enough (v7x megacore)."""
    if b_pad <= max_tile and b_pad < split_threshold:
        return b_pad                      # single tile, whole batch in one step
    cap = min(max_tile, (b_pad // 2) // 8 * 8)
    for t in range(cap, 7, -8):
        if b_pad % t == 0:
            return t
    return b_pad


# --------------------------------- kernel ----------------------------------

def dqn_fused_kernel(idx_ref, batt_ref, weff_ref, w2_ref, w3_ref, vec_ref,
                     o_ref):
    tb = idx_ref.shape[0]
    n_pad_in = weff_ref.shape[0]          # padded num_nodes (one-hot width)
    hidden = w2_ref.shape[0]
    n_pad_out = w3_ref.shape[1]           # padded fc3 output width
    n_out = o_ref.shape[1]                # real num_nodes

    # Packed small vectors: row 0 = w1 battery row, 1 = b1, 2 = b2, 3 = b3.
    w1b = vec_ref[0:1, :hidden]
    b1 = vec_ref[1:2, :hidden]
    b2 = vec_ref[2:3, :hidden]
    b3 = vec_ref[3:4, :n_pad_out]

    # ---- fused embedding gather + fc1: one-hot (exact in bf16) @ W_eff ----
    idx = idx_ref[...]                                             # (TB,1) i32
    lanes = jax.lax.broadcasted_iota(jnp.int32, (tb, n_pad_in), 1)
    onehot = (lanes == idx).astype(jnp.bfloat16)                   # (TB,128)
    h1 = jnp.dot(onehot, weff_ref[...],
                 preferred_element_type=jnp.float32)               # (TB,H) f32
    h1 = h1 + batt_ref[...] * w1b + b1                             # rank-1 batt
    h1 = jnp.maximum(h1, 0.0)

    # ---- fc2 + ReLU ----
    h2 = jnp.dot(h1.astype(jnp.bfloat16), w2_ref[...],
                 preferred_element_type=jnp.float32) + b2
    h2 = jnp.maximum(h2, 0.0)

    # ---- fc3; store only the real num_nodes columns (compact output) ----
    q = jnp.dot(h2.astype(jnp.bfloat16), w3_ref[...],
                preferred_element_type=jnp.float32) + b3           # (TB,128)
    o_ref[...] = q[:, :n_out]                                      # (TB,32) f32


# -------------------------------- wrapper -----------------------------------

def dqn_forward(node_idx, battery_charge, params, *, tile_b=None):
    """node_idx: (B,) int32, battery_charge: (B,) f32 -> (B, num_nodes) f32."""
    B = node_idx.shape[0]
    num_nodes = params["num_nodes"]
    n_pad = params["w_eff"].shape[0]
    hidden = params["w2"].shape[0]
    n_pad_out = params["w3"].shape[1]

    b_pad = _round_up(max(B, 1), 8)
    if tile_b is None:
        tile_b = _pick_tile_b(b_pad)
    assert b_pad % tile_b == 0

    if b_pad == B:
        idx_col = node_idx.astype(jnp.int32).reshape(B, 1)
        batt_col = battery_charge.astype(jnp.float32).reshape(B, 1)
    else:  # only pad when B is not a multiple of 8
        idx_col = jnp.zeros((b_pad, 1), jnp.int32).at[:B, 0].set(
            node_idx.astype(jnp.int32))
        batt_col = jnp.zeros((b_pad, 1), jnp.float32).at[:B, 0].set(
            battery_charge.astype(jnp.float32))

    grid = (b_pad // tile_b,)
    batch_spec = lambda shape: pl.BlockSpec(shape, lambda i: (i, 0))
    weight_spec = lambda shape: pl.BlockSpec(shape, lambda i: (0, 0))

    q = pl.pallas_call(
        dqn_fused_kernel,
        out_shape=jax.ShapeDtypeStruct((b_pad, num_nodes), jnp.float32),
        grid=grid,
        in_specs=[
            batch_spec((tile_b, 1)),                  # node_idx column (i32)
            batch_spec((tile_b, 1)),                  # battery column (f32)
            weight_spec((n_pad, hidden)),             # W_eff (bf16)
            weight_spec((hidden, hidden)),            # W2 (bf16)
            weight_spec((hidden, n_pad_out)),         # W3 (bf16, padded lanes)
            weight_spec(params["vecs"].shape),        # packed w1b/b1/b2/b3 (f32)
        ],
        out_specs=batch_spec((tile_b, num_nodes)),    # compact 32-wide output
        compiler_params=pltpu.CompilerParams(
            dimension_semantics=("parallel",)),
    )(idx_col, batt_col, params["w_eff"], params["w2"], params["w3"],
      params["vecs"])

    if b_pad != B:
        q = q[:B]
    return q


# ----------------------------- parameter init -------------------------------

def xavier_uniform(key, fan_in, fan_out):
    bound = jnp.sqrt(6.0 / (fan_in + fan_out))
    return jax.random.uniform(key, (fan_in, fan_out), dtype=jnp.float32,
                              minval=-bound, maxval=bound)


def init_dqn_params(key, num_nodes, embedding_dim=16, hidden_dim=128):
    k_emb, k1, k2, k3 = jax.random.split(key, 4)
    n_pad = _round_up(num_nodes, LANE)

    # nn.Embedding default init: N(0, 1). Linear: xavier_uniform, zero bias.
    emb = jax.random.normal(k_emb, (num_nodes, embedding_dim), jnp.float32)
    w1 = xavier_uniform(k1, embedding_dim + 1, hidden_dim)
    w2 = xavier_uniform(k2, hidden_dim, hidden_dim)
    w3 = xavier_uniform(k3, hidden_dim, num_nodes)

    # Fold the embedding gather into fc1: W_eff[n] = emb[n] @ W1[:E] (f32),
    # one bf16 rounding, zero-padded to 128 one-hot lanes.
    w_eff = jnp.zeros((n_pad, hidden_dim), jnp.float32)
    w_eff = w_eff.at[:num_nodes].set(emb @ w1[:embedding_dim])

    # fc3 weight padded to 128 output lanes (MXU lane alignment).
    w3_pad = jnp.zeros((hidden_dim, n_pad), jnp.float32)
    w3_pad = w3_pad.at[:, :num_nodes].set(w3)

    # Pack the small per-feature vectors into a single (8, lane) f32 operand.
    vec_w = max(hidden_dim, n_pad)
    vecs = jnp.zeros((8, vec_w), jnp.float32)
    vecs = vecs.at[0, :hidden_dim].set(w1[embedding_dim])    # battery row of W1
    # rows 1..3 are b1 / b2 / b3 — zeros per the PyTorch init, kept for clarity

    return {
        "num_nodes": num_nodes,
        "embedding_dim": embedding_dim,
        # kernel operands
        "w_eff": w_eff.astype(jnp.bfloat16),
        "w2": w2.astype(jnp.bfloat16),
        "w3": w3_pad.astype(jnp.bfloat16),
        "vecs": vecs,
        # f32 originals for the PyTorch-equivalent reference
        "emb_f32": emb, "w1_f32": w1, "w2_f32": w2, "w3_f32": w3,
    }


# ------------------------------- references ---------------------------------

def ref_forward_same_precision(node_idx, battery, p):
    """Same bf16-operand / f32-accumulate math as the kernel, in plain JAX."""
    hidden = p["w2"].shape[0]
    n_pad_out = p["w3"].shape[1]
    w1b = p["vecs"][0:1, :hidden]
    b1 = p["vecs"][1:2, :hidden]
    b2 = p["vecs"][2:3, :hidden]
    b3 = p["vecs"][3:4, :n_pad_out]

    h1 = p["w_eff"][node_idx].astype(jnp.float32)      # exact one-hot gather
    h1 = jnp.maximum(h1 + battery[:, None] * w1b + b1, 0.0)
    h2 = jnp.dot(h1.astype(jnp.bfloat16), p["w2"],
                 preferred_element_type=jnp.float32) + b2
    h2 = jnp.maximum(h2, 0.0)
    q = jnp.dot(h2.astype(jnp.bfloat16), p["w3"],
                preferred_element_type=jnp.float32) + b3
    return q[:, :p["num_nodes"]]


def ref_forward_f32(node_idx, battery, p):
    """Full f32 reference (PyTorch-equivalent math) for a loose sanity check."""
    emb = p["emb_f32"][node_idx]
    x = jnp.concatenate([emb, battery[:, None]], axis=1)
    h1 = jnp.maximum(x @ p["w1_f32"], 0.0)             # biases are zero
    h2 = jnp.maximum(h1 @ p["w2_f32"], 0.0)
    return h2 @ p["w3_f32"]


# ---------------------------------- main -------------------------------------

if __name__ == "__main__":
    num_nodes = 32
    embedding_dim = 16
    hidden_dim = 128
    batch = 8

    key = jax.random.PRNGKey(0)
    k_params, k_idx, k_batt = jax.random.split(key, 3)

    params = init_dqn_params(k_params, num_nodes, embedding_dim, hidden_dim)
    node_idx = jax.random.randint(k_idx, (batch,), 0, num_nodes, dtype=jnp.int32)
    battery_charge = jax.random.uniform(k_batt, (batch,), dtype=jnp.float32)

    q_values = dqn_forward(node_idx, battery_charge, params)
    jax.block_until_ready(q_values)
    assert q_values.shape == (batch, num_nodes)

    # Tight check against the identical-precision reference.
    ref_bf16 = ref_forward_same_precision(node_idx, battery_charge, params)
    assert jnp.allclose(q_values, ref_bf16, atol=2e-3, rtol=2e-3), (
        jnp.max(jnp.abs(q_values - ref_bf16)))

    # Loose check against the f32 PyTorch-equivalent math (bf16 weight rounding).
    ref_f32 = ref_forward_f32(node_idx, battery_charge, params)
    assert jnp.allclose(q_values, ref_f32, atol=1e-1, rtol=1e-1), (
        jnp.max(jnp.abs(q_values - ref_f32)))

    print("KERNEL_OK")
</pallas_src>

<mosaic_0001>
module attributes {stable_mosaic.version = 11 : i64} {
  func.func @dqn_fused_kernel(%arg0: i32, %arg1: memref<8x1xi32, #tpu.memory_space<vmem>>, %arg2: memref<8x1xf32, #tpu.memory_space<vmem>>, %arg3: memref<128x128xbf16, #tpu.memory_space<vmem>>, %arg4: memref<128x128xbf16, #tpu.memory_space<vmem>>, %arg5: memref<128x128xbf16, #tpu.memory_space<vmem>>, %arg6: memref<8x128xf32, #tpu.memory_space<vmem>>, %arg7: memref<8x32xf32, #tpu.memory_space<vmem>>) attributes {dimension_semantics = [#tpu.dimension_semantics<parallel>], iteration_bounds = array<i64: 1>, scalar_prefetch = 0 : i64, scratch_operands = 0 : i64, tpu.core_type = #tpu.core_type<tc>, window_params = [{transform_indices = @transform_0, window_bounds = array<i64: 8, 1>}, {transform_indices = @transform_1, window_bounds = array<i64: 8, 1>}, {pipeline_mode = #tpu.pipeline_mode<synchronous>, transform_indices = @transform_2, window_bounds = array<i64: 128, 128>}, {pipeline_mode = #tpu.pipeline_mode<synchronous>, transform_indices = @transform_3, window_bounds = array<i64: 128, 128>}, {pipeline_mode = #tpu.pipeline_mode<synchronous>, transform_indices = @transform_4, window_bounds = array<i64: 128, 128>}, {pipeline_mode = #tpu.pipeline_mode<synchronous>, transform_indices = @transform_5, window_bounds = array<i64: 8, 128>}, {transform_indices = @transform_6, window_bounds = array<i64: 8, 32>}]} {
    %c0 = arith.constant 0 : index
    %c0_0 = arith.constant 0 : index
    %0 = vector.load %arg6[%c0, %c0_0] : memref<8x128xf32, #tpu.memory_space<vmem>>, vector<1x128xf32>
    %c1 = arith.constant 1 : index
    %c0_1 = arith.constant 0 : index
    %1 = vector.load %arg6[%c1, %c0_1] : memref<8x128xf32, #tpu.memory_space<vmem>>, vector<1x128xf32>
    %c2 = arith.constant 2 : index
    %c0_2 = arith.constant 0 : index
    %2 = vector.load %arg6[%c2, %c0_2] : memref<8x128xf32, #tpu.memory_space<vmem>>, vector<1x128xf32>
    %c3 = arith.constant 3 : index
    %c0_3 = arith.constant 0 : index
    %3 = vector.load %arg6[%c3, %c0_3] : memref<8x128xf32, #tpu.memory_space<vmem>>, vector<1x128xf32>
    %c0_4 = arith.constant 0 : index
    %c0_5 = arith.constant 0 : index
    %4 = vector.load %arg1[%c0_4, %c0_5] : memref<8x1xi32, #tpu.memory_space<vmem>>, vector<8x1xi32>
    %5 = tpu.iota {dimensions = array<i32: 1>} : vector<8x128xi32>
    %6 = vector.broadcast %4 : vector<8x1xi32> to vector<8x128xi32>
    %7 = arith.cmpi eq, %5, %6 : vector<8x128xi32>
    %8 = arith.extui %7 : vector<8x128xi1> to vector<8x128xi32>
    %9 = arith.sitofp %8 : vector<8x128xi32> to vector<8x128xf32>
    %10 = arith.truncf %9 : vector<8x128xf32> to vector<8x128xbf16>
    %c0_6 = arith.constant 0 : index
    %c0_7 = arith.constant 0 : index
    %11 = vector.load %arg3[%c0_6, %c0_7] : memref<128x128xbf16, #tpu.memory_space<vmem>>, vector<128x128xbf16>
    %cst = arith.constant dense<0.000000e+00> : vector<8x128xf32>
    %12 = tpu.matmul %10, %11, %cst {dimension_numbers = #tpu.dot_dimension_numbers<[1], [0], [0], [1], [0, 0, 1, 1], [], []>} : vector<8x128xbf16>, vector<128x128xbf16>, vector<8x128xf32> -> vector<8x128xf32>
    %c0_8 = arith.constant 0 : index
    %c0_9 = arith.constant 0 : index
    %13 = vector.load %arg2[%c0_8, %c0_9] : memref<8x1xf32, #tpu.memory_space<vmem>>, vector<8x1xf32>
    %14 = vector.broadcast %13 : vector<8x1xf32> to vector<8x128xf32>
    %15 = vector.broadcast %0 : vector<1x128xf32> to vector<8x128xf32>
    %16 = arith.mulf %14, %15 : vector<8x128xf32>
    %17 = arith.addf %12, %16 : vector<8x128xf32>
    %18 = vector.broadcast %1 : vector<1x128xf32> to vector<8x128xf32>
    %19 = arith.addf %17, %18 : vector<8x128xf32>
    %cst_10 = arith.constant 0.000000e+00 : f32
    %20 = vector.broadcast %cst_10 : f32 to vector<8x128xf32>
    %21 = arith.maximumf %19, %20 : vector<8x128xf32>
    %22 = arith.truncf %21 : vector<8x128xf32> to vector<8x128xbf16>
    %c0_11 = arith.constant 0 : index
    %c0_12 = arith.constant 0 : index
    %23 = vector.load %arg4[%c0_11, %c0_12] : memref<128x128xbf16, #tpu.memory_space<vmem>>, vector<128x128xbf16>
    %cst_13 = arith.constant dense<0.000000e+00> : vector<8x128xf32>
    %24 = tpu.matmul %22, %23, %cst_13 {dimension_numbers = #tpu.dot_dimension_numbers<[1], [0], [0], [1], [0, 0, 1, 1], [], []>} : vector<8x128xbf16>, vector<128x128xbf16>, vector<8x128xf32> -> vector<8x128xf32>
    %25 = vector.broadcast %2 : vector<1x128xf32> to vector<8x128xf32>
    %26 = arith.addf %24, %25 : vector<8x128xf32>
    %cst_14 = arith.constant 0.000000e+00 : f32
    %27 = vector.broadcast %cst_14 : f32 to vector<8x128xf32>
    %28 = arith.maximumf %26, %27 : vector<8x128xf32>
    %29 = arith.truncf %28 : vector<8x128xf32> to vector<8x128xbf16>
    %c0_15 = arith.constant 0 : index
    %c0_16 = arith.constant 0 : index
    %30 = vector.load %arg5[%c0_15, %c0_16] : memref<128x128xbf16, #tpu.memory_space<vmem>>, vector<128x128xbf16>
    %cst_17 = arith.constant dense<0.000000e+00> : vector<8x128xf32>
    %31 = tpu.matmul %29, %30, %cst_17 {dimension_numbers = #tpu.dot_dimension_numbers<[1], [0], [0], [1], [0, 0, 1, 1], [], []>} : vector<8x128xbf16>, vector<128x128xbf16>, vector<8x128xf32> -> vector<8x128xf32>
    %32 = vector.broadcast %3 : vector<1x128xf32> to vector<8x128xf32>
    %33 = arith.addf %31, %32 : vector<8x128xf32>
    %34 = vector.extract_strided_slice %33 {offsets = [0, 0], sizes = [8, 32], strides = [1, 1]} : vector<8x128xf32> to vector<8x32xf32>
    %c0_18 = arith.constant 0 : index
    %c0_19 = arith.constant 0 : index
    %35 = vector.load %arg7[%c0_18, %c0_19] : memref<8x32xf32, #tpu.memory_space<vmem>>, vector<8x32xf32>
    tpu.vector_store %arg7[%c0_18, %c0_19], %34 {strides = array<i32>} : memref<8x32xf32, #tpu.memory_space<vmem>>, vector<8x32xf32>,
    return
  }
  func.func @transform_0(%arg0: i32) -> (i32, i32) {
    %c0_i32 = arith.constant 0 : i32
    %c0_i32_0 = arith.constant 0 : i32
    return %arg0, %c0_i32 : i32, i32
  }
  func.func @transform_1(%arg0: i32) -> (i32, i32) {
    %c0_i32 = arith.constant 0 : i32
    %c0_i32_0 = arith.constant 0 : i32
    return %arg0, %c0_i32 : i32, i32
  }
  func.func @transform_2(%arg0: i32) -> (i32, i32) {
    %c0_i32 = arith.constant 0 : i32
    %c0_i32_0 = arith.constant 0 : i32
    %c0_i32_1 = arith.constant 0 : i32
    return %c0_i32, %c0_i32_0 : i32, i32
  }
  func.func @transform_3(%arg0: i32) -> (i32, i32) {
    %c0_i32 = arith.constant 0 : i32
    %c0_i32_0 = arith.constant 0 : i32
    %c0_i32_1 = arith.constant 0 : i32
    return %c0_i32, %c0_i32_0 : i32, i32
  }
  func.func @transform_4(%arg0: i32) -> (i32, i32) {
    %c0_i32 = arith.constant 0 : i32
    %c0_i32_0 = arith.constant 0 : i32
    %c0_i32_1 = arith.constant 0 : i32
    return %c0_i32, %c0_i32_0 : i32, i32
  }
  func.func @transform_5(%arg0: i32) -> (i32, i32) {
    %c0_i32 = arith.constant 0 : i32
    %c0_i32_0 = arith.constant 0 : i32
    %c0_i32_1 = arith.constant 0 : i32
    return %c0_i32, %c0_i32_0 : i32, i32
  }
  func.func @transform_6(%arg0: i32) -> (i32, i32) {
    %c0_i32 = arith.constant 0 : i32
    %c0_i32_0 = arith.constant 0 : i32
    return %arg0, %c0_i32 : i32, i32
  }
}

</mosaic_0001>

<llo_original>
// kernel: tpu_custom_call.1
$region0: #{tpu_custom_call.1}
  #allocation0 [shape = 'u32[]', space=smem, size = 0x4, offset = 0x4, fixed_abs, tag = 'smem constant byte address 0x4 - core index']
  #allocation1 [shape = 'u32[144,128]{1,0:T(1,128)}', space=vmem, size = 0x12000, scoped, tag = 'internal scratch']
  %s0 = inlined_call_operand.vmem [shape: s32[8,1], index: 0, kind: input, shape index: {}]
  %s1 = inlined_call_operand.vmem [shape: f32[8,1], index: 1, kind: input, shape index: {}]
  %s2 = inlined_call_operand.hbm [shape: bf16[128,128], index: 2, kind: input, shape index: {}]
  %s3 = inlined_call_operand.hbm [shape: bf16[128,128], index: 3, kind: input, shape index: {}]
  %s4 = inlined_call_operand.hbm [shape: bf16[128,128], index: 4, kind: input, shape index: {}]
  %s5 = inlined_call_operand.vmem [shape: f32[8,128], index: 5, kind: input, shape index: {}]
  %s6 = inlined_call_operand.hbm [shape: f32[8,32], index: 6, kind: output, shape index: {}]
  %s7 = sld [smem:[#allocation0]]
  $region46: #{tpu_custom_call.1} parent=0
    _
  %s9 = ssub.s32 1, %s7
  %s10 = scalar_select 0, %s9, %s7
  $region1: #{tpu_custom_call.1} parent=0
    #allocation2 [shape = 'u8[32768]{0}', space=vmem, size = 0x8000, scoped, tag = 'input window, operand 2, single buffered']
    #allocation3 [shape = 's32[1]{0}', space=sflag, size = 0x4, scoped, tag = 'scoped memory for tpu_custom_call.1']
    #allocation4 [shape = 's32[1]{0}', space=sflag, size = 0x4, scoped, tag = 'scoped memory for tpu_custom_call.1']
    #allocation5 [shape = 'u8[32768]{0}', space=vmem, size = 0x8000, scoped, tag = 'input window, operand 3, single buffered']
    #allocation6 [shape = 's32[1]{0}', space=sflag, size = 0x4, scoped, tag = 'scoped memory for tpu_custom_call.1']
    #allocation7 [shape = 'u8[32768]{0}', space=vmem, size = 0x8000, scoped, tag = 'input window, operand 4, single buffered']
    #allocation8 [shape = 'u8[4096]{0}', space=vmem, size = 0x1000, scoped, tag = 'output window, operand 0, single buffered']
    %11 = vsyncpa [#allocation3], 0
    %12 = vsyncpa [#allocation6], 0
    %13 = vsyncpa [#allocation4], 0
    // Predicated region
    $region2: #{tpu_custom_call.1} parent=1 // pred_check
      _
    $region3: #{tpu_custom_call.1} parent=1 // pred_check_branch
      %15 = sbr.rel (0) target = $region5
    $region4: #{tpu_custom_call.1} parent=1 // pred_region
      _
    $region5: #{tpu_custom_call.1} parent=1 // pred_fallthru
      _
    // Predicated region
    $region6: #{tpu_custom_call.1} parent=1 // pred_check
      _
    $region7: #{tpu_custom_call.1} parent=1 // pred_check_branch
      %17 = sbr.rel (0) target = $region9
    $region8: #{tpu_custom_call.1} parent=1 // pred_region
      _
    $region9: #{tpu_custom_call.1} parent=1 // pred_fallthru
      _
    // Predicated region
    $region10: #{tpu_custom_call.1} parent=1 // pred_check
      _
    $region11: #{tpu_custom_call.1} parent=1 // pred_check_branch
      %19 = sbr.rel (0) target = $region13
    $region12: #{tpu_custom_call.1} parent=1 // pred_region
      %s21 = ssub.s32 1024, 1024
      %22 = vsyncadd [#allocation3], %s21
      %s23 = sshll.u32 [#allocation2], 4
      %s24 = int_to_ptr.vmem [resolvable:$true] %s23
      %29 = dma.hbm_to_vmem [thread:$0]  %s2, 1024, %s24, [#allocation3], 64, 64, 4
    $region13: #{tpu_custom_call.1} parent=1 // pred_fallthru
      _
    // Predicated region
    $region14: #{tpu_custom_call.1} parent=1 // pred_check
      _
    $region15: #{tpu_custom_call.1} parent=1 // pred_check_branch
      %31 = sbr.rel (0) target = $region17
    $region16: #{tpu_custom_call.1} parent=1 // pred_region
      %s33 = ssub.s32 1024, 1024
      %34 = vsyncadd [#allocation6], %s33
      %s35 = sshll.u32 [#allocation5], 4
      %s36 = int_to_ptr.vmem [resolvable:$true] %s35
      %41 = dma.hbm_to_vmem [thread:$0]  %s3, 1024, %s36, [#allocation6], 64, 64, 4
    $region17: #{tpu_custom_call.1} parent=1 // pred_fallthru
      _
    // Predicated region
    $region18: #{tpu_custom_call.1} parent=1 // pred_check
      _
    $region19: #{tpu_custom_call.1} parent=1 // pred_check_branch
      %43 = sbr.rel (0) target = $region21
    $region20: #{tpu_custom_call.1} parent=1 // pred_region
      %s45 = ssub.s32 1024, 1024
      %46 = vsyncadd [#allocation6], %s45
      %s47 = sshll.u32 [#allocation7], 4
      %s48 = int_to_ptr.vmem [resolvable:$true] %s47
      %53 = dma.hbm_to_vmem [thread:$0]  %s4, 1024, %s48, [#allocation6], 64, 64, 4
    $region21: #{tpu_custom_call.1} parent=1 // pred_fallthru
      _
    // Predicated region
    $region22: #{tpu_custom_call.1} parent=1 // pred_check
      _
    $region23: #{tpu_custom_call.1} parent=1 // pred_check_branch
      %55 = sbr.rel (0) target = $region25
    $region24: #{tpu_custom_call.1} parent=1 // pred_region
      _
    $region25: #{tpu_custom_call.1} parent=1 // pred_fallthru
      _
    // Predicated region
    $region26: #{tpu_custom_call.1} parent=1 // pred_check
      _
    $region27: #{tpu_custom_call.1} parent=1 // pred_check_branch
      %57 = sbr.rel (0) target = $region29
    $region28: #{tpu_custom_call.1} parent=1 // pred_region
      %58 = dma.done [#allocation3], 1024
    $region29: #{tpu_custom_call.1} parent=1 // pred_fallthru
      _
    // Predicated region
    $region30: #{tpu_custom_call.1} parent=1 // pred_check
      _
    $region31: #{tpu_custom_call.1} parent=1 // pred_check_branch
      %60 = sbr.rel (0) target = $region33
    $region32: #{tpu_custom_call.1} parent=1 // pred_region
      %61 = dma.done [#allocation6], 1024
    $region33: #{tpu_custom_call.1} parent=1 // pred_fallthru
      _
    // Predicated region
    $region34: #{tpu_custom_call.1} parent=1 // pred_check
      _
    $region35: #{tpu_custom_call.1} parent=1 // pred_check_branch
      %63 = sbr.rel (0) target = $region37
    $region36: #{tpu_custom_call.1} parent=1 // pred_region
      %64 = dma.done [#allocation6], 1024
    $region37: #{tpu_custom_call.1} parent=1 // pred_fallthru
      _
    %v66 = vld [vmem:[%s5] sm:$0x1]
    %v67 = vld [vmem:[%s5 + $0x1] sm:$0x1]
    %v68 = vld [vmem:[%s5 + $0x2] sm:$0x1]
    %v69 = vld [vmem:[%s5 + $0x3] sm:$0x1]
    %v70 = vld [vmem:[%s0] sm:$0xff]
    %v71 = vlaneseq
    %v72 = vand.u32 %v71, 127
    %73 = vset.pattern.permute.xlu0 0
    %74 = vperm.xlu0 %73, %v70
    %v75 = vpop.permute.xlu0 %74
    %vm76 = vcmp.eq.s32.totalorder %v72, %v75
    %v77 = vsel %vm76, 1, 0
    %v78 = vcvt.s32.f32 %v77
    %v79 = vpack.c.bf16 %v78, %v78
    %v80 = vld [vmem:[#allocation2] sm:$0xf]
    %v81 = vld [vmem:[#allocation2 + $0x4] sm:$0xf]
    %v82 = vld [vmem:[#allocation2 + $0x8] sm:$0xf]
    %v83 = vld [vmem:[#allocation2 + $0xc] sm:$0xf]
    %v84 = vld [vmem:[#allocation2 + $0x10] sm:$0xf]
    %v85 = vld [vmem:[#allocation2 + $0x14] sm:$0xf]
    %v86 = vld [vmem:[#allocation2 + $0x18] sm:$0xf]
    %v87 = vld [vmem:[#allocation2 + $0x1c] sm:$0xf]
    %v88 = vld [vmem:[#allocation2 + $0x20] sm:$0xf]
    %v89 = vld [vmem:[#allocation2 + $0x24] sm:$0xf]
    %v90 = vld [vmem:[#allocation2 + $0x28] sm:$0xf]
    %v91 = vld [vmem:[#allocation2 + $0x2c] sm:$0xf]
    %v92 = vld [vmem:[#allocation2 + $0x30] sm:$0xf]
    %v93 = vld [vmem:[#allocation2 + $0x34] sm:$0xf]
    %v94 = vld [vmem:[#allocation2 + $0x38] sm:$0xf]
    %v95 = vld [vmem:[#allocation2 + $0x3c] sm:$0xf]
    %v96 = vld [vmem:[%s1] sm:$0xff]
    %98 = vset.pattern.permute.xlu0 0
    %99 = vperm.xlu0 %98, %v96
    %v100 = vpop.permute.xlu0 %99
    %v102 = vlaneseq
    %v103 = vshrl.u32 %v102, 7
    %v104 = vsub.s32 0, %v103
    %v105 = vrot.slane %v66, %v104
    %v106 = vmul.f32 %v100, %v105
    %v123 = vunpack.c.l.b16 %v80
    %v124 = vunpack.c.l.b16 %v81
    %v125 = vunpack.c.l.b16 %v82
    %v126 = vunpack.c.l.b16 %v83
    %v127 = vunpack.c.l.b16 %v84
    %v128 = vunpack.c.l.b16 %v85
    %v129 = vunpack.c.l.b16 %v86
    %v130 = vunpack.c.l.b16 %v87
    %v131 = vunpack.c.l.b16 %v88
    %v132 = vunpack.c.l.b16 %v89
    %v133 = vunpack.c.l.b16 %v90
    %v134 = vunpack.c.l.b16 %v91
    %v135 = vunpack.c.l.b16 %v92
    %v136 = vunpack.c.l.b16 %v93
    %v137 = vunpack.c.l.b16 %v94
    %v138 = vunpack.c.l.b16 %v95
    %v139 = vpack.c.b16 %v124, %v123
    %v140 = vpack.c.b16 %v126, %v125
    %v141 = vpack.c.b16 %v128, %v127
    %v142 = vpack.c.b16 %v130, %v129
    %v143 = vpack.c.b16 %v132, %v131
    %v144 = vpack.c.b16 %v134, %v133
    %v145 = vpack.c.b16 %v136, %v135
    %v146 = vpack.c.b16 %v138, %v137
    %155 = vmatprep.subr.bf16.mxu0 0
    %156 = vmatpush1.bf16.msra.mxu0 %v139
    %157 = vmatprep.subr.bf16.mxu0 0
    %158 = vmatpush1.bf16.msra.mxu0 %v140
    %159 = vmatprep.subr.bf16.mxu0 0
    %160 = vmatpush1.bf16.msra.mxu0 %v141
    %161 = vmatprep.subr.bf16.mxu0 0
    %162 = vmatpush1.bf16.msra.mxu0 %v142
    %163 = vmatprep.subr.bf16.mxu0 0
    %164 = vmatpush1.bf16.msra.mxu0 %v143
    %165 = vmatprep.subr.bf16.mxu0 0
    %166 = vmatpush1.bf16.msra.mxu0 %v144
    %167 = vmatprep.subr.bf16.mxu0 0
    %168 = vmatpush1.bf16.msra.mxu0 %v145
    %169 = vmatprep.subr.bf16.mxu0 0
    %170 = vmatpush1.bf16.msra.mxu0 %v146
    %171 = vmatprep.subr.bf16.mxu0 0
    %172 = vmatpush1.bf16.msra.mxu0 0
    %173 = vmatprep.subr.bf16.mxu0 0
    %174 = vmatpush1.bf16.msra.mxu0 0
    %175 = vmatprep.subr.bf16.mxu0 0
    %176 = vmatpush1.bf16.msra.mxu0 0
    %177 = vmatprep.subr.bf16.mxu0 0
    %178 = vmatpush1.bf16.msra.mxu0 0
    %179 = vmatprep.subr.bf16.mxu0 0
    %180 = vmatpush1.bf16.msra.mxu0 0
    %181 = vmatprep.subr.bf16.mxu0 0
    %182 = vmatpush1.bf16.msra.mxu0 0
    %183 = vmatprep.subr.bf16.mxu0 0
    %184 = vmatpush1.bf16.msra.mxu0 0
    %185 = vmatprep.subr.bf16.mxu0 0
    %186 = vmatpush1.bf16.msra.mxu0 0
    %187 = vmatprep.mubr.bf16.mxu0 0
    %188 = vmatmul.mubr.bf16.gmra.mrb[0].mxu0 %v79
    %v189 = vpop.f32.mrb[0].mxu0
    %v190 = vadd.f32 %v106, %v189
    %v191 = vpop.f32.mrb[0].mxu0
    %v192 = vpop.f32.mrb[0].mxu0
    %v193 = vpop.f32.mrb[0].mxu0
    %194 = vdwg.mxu0
    %v195 = vlaneseq
    %v196 = vshrl.u32 %v195, 7
    %v197 = vsub.s32 0, %v196
    %v198 = vrot.slane %v67, %v197
    %v199 = vadd.f32 %v190, %v198
    %v200 = vmax.f32 %v199, 0.0
    %v201 = vpack.c.bf16 %v200, %v200
    %v202 = vld [vmem:[#allocation5] sm:$0xf]
    %v203 = vld [vmem:[#allocation5 + $0x4] sm:$0xf]
    %v204 = vld [vmem:[#allocation5 + $0x8] sm:$0xf]
    %v205 = vld [vmem:[#allocation5 + $0xc] sm:$0xf]
    %v206 = vld [vmem:[#allocation5 + $0x10] sm:$0xf]
    %v207 = vld [vmem:[#allocation5 + $0x14] sm:$0xf]
    %v208 = vld [vmem:[#allocation5 + $0x18] sm:$0xf]
    %v209 = vld [vmem:[#allocation5 + $0x1c] sm:$0xf]
    %v210 = vld [vmem:[#allocation5 + $0x20] sm:$0xf]
    %v211 = vld [vmem:[#allocation5 + $0x24] sm:$0xf]
    %v212 = vld [vmem:[#allocation5 + $0x28] sm:$0xf]
    %v213 = vld [vmem:[#allocation5 + $0x2c] sm:$0xf]
    %v214 = vld [vmem:[#allocation5 + $0x30] sm:$0xf]
    %v215 = vld [vmem:[#allocation5 + $0x34] sm:$0xf]
    %v216 = vld [vmem:[#allocation5 + $0x38] sm:$0xf]
    %v217 = vld [vmem:[#allocation5 + $0x3c] sm:$0xf]
    %v218 = vlaneseq
    %v219 = vshrl.u32 %v218, 7
    %v220 = vsub.s32 0, %v219
    %v221 = vrot.slane %v68, %v220
    %v238 = vunpack.c.l.b16 %v202
    %v239 = vunpack.c.l.b16 %v203
    %v240 = vunpack.c.l.b16 %v204
    %v241 = vunpack.c.l.b16 %v205
    %v242 = vunpack.c.l.b16 %v206
    %v243 = vunpack.c.l.b16 %v207
    %v244 = vunpack.c.l.b16 %v208
    %v245 = vunpack.c.l.b16 %v209
    %v246 = vunpack.c.l.b16 %v210
    %v247 = vunpack.c.l.b16 %v211
    %v248 = vunpack.c.l.b16 %v212
    %v249 = vunpack.c.l.b16 %v213
    %v250 = vunpack.c.l.b16 %v214
    %v251 = vunpack.c.l.b16 %v215
    %v252 = vunpack.c.l.b16 %v216
    %v253 = vunpack.c.l.b16 %v217
    %v254 = vpack.c.b16 %v239, %v238
    %v255 = vpack.c.b16 %v241, %v240
    %v256 = vpack.c.b16 %v243, %v242
    %v257 = vpack.c.b16 %v245, %v244
    %v258 = vpack.c.b16 %v247, %v246
    %v259 = vpack.c.b16 %v249, %v248
    %v260 = vpack.c.b16 %v251, %v250
    %v261 = vpack.c.b16 %v253, %v252
    %270 = vmatprep.subr.bf16.mxu0 0
    %271 = vmatpush1.bf16.msra.mxu0 %v254
    %272 = vmatprep.subr.bf16.mxu0 0
    %273 = vmatpush1.bf16.msra.mxu0 %v255
    %274 = vmatprep.subr.bf16.mxu0 0
    %275 = vmatpush1.bf16.msra.mxu0 %v256
    %276 = vmatprep.subr.bf16.mxu0 0
    %277 = vmatpush1.bf16.msra.mxu0 %v257
    %278 = vmatprep.subr.bf16.mxu0 0
    %279 = vmatpush1.bf16.msra.mxu0 %v258
    %280 = vmatprep.subr.bf16.mxu0 0
    %281 = vmatpush1.bf16.msra.mxu0 %v259
    %282 = vmatprep.subr.bf16.mxu0 0
    %283 = vmatpush1.bf16.msra.mxu0 %v260
    %284 = vmatprep.subr.bf16.mxu0 0
    %285 = vmatpush1.bf16.msra.mxu0 %v261
    %286 = vmatprep.subr.bf16.mxu0 0
    %287 = vmatpush1.bf16.msra.mxu0 0
    %288 = vmatprep.subr.bf16.mxu0 0
    %289 = vmatpush1.bf16.msra.mxu0 0
    %290 = vmatprep.subr.bf16.mxu0 0
    %291 = vmatpush1.bf16.msra.mxu0 0
    %292 = vmatprep.subr.bf16.mxu0 0
    %293 = vmatpush1.bf16.msra.mxu0 0
    %294 = vmatprep.subr.bf16.mxu0 0
    %295 = vmatpush1.bf16.msra.mxu0 0
    %296 = vmatprep.subr.bf16.mxu0 0
    %297 = vmatpush1.bf16.msra.mxu0 0
    %298 = vmatprep.subr.bf16.mxu0 0
    %299 = vmatpush1.bf16.msra.mxu0 0
    %300 = vmatprep.subr.bf16.mxu0 0
    %301 = vmatpush1.bf16.msra.mxu0 0
    %302 = vmatprep.mubr.bf16.mxu0 0
    %303 = vmatmul.mubr.bf16.gmra.mrb[0].mxu0 %v201
    %v304 = vpop.f32.mrb[0].mxu0
    %v305 = vadd.f32 %v221, %v304
    %v306 = vpop.f32.mrb[0].mxu0
    %v307 = vpop.f32.mrb[0].mxu0
    %v308 = vpop.f32.mrb[0].mxu0
    %309 = vdwg.mxu0
    %v310 = vmax.f32 %v305, 0.0
    %v311 = vpack.c.bf16 %v310, %v310
    %v312 = vld [vmem:[#allocation7] sm:$0xf]
    %v313 = vld [vmem:[#allocation7 + $0x4] sm:$0xf]
    %v314 = vld [vmem:[#allocation7 + $0x8] sm:$0xf]
    %v315 = vld [vmem:[#allocation7 + $0xc] sm:$0xf]
    %v316 = vld [vmem:[#allocation7 + $0x10] sm:$0xf]
    %v317 = vld [vmem:[#allocation7 + $0x14] sm:$0xf]
    %v318 = vld [vmem:[#allocation7 + $0x18] sm:$0xf]
    %v319 = vld [vmem:[#allocation7 + $0x1c] sm:$0xf]
    %v320 = vld [vmem:[#allocation7 + $0x20] sm:$0xf]
    %v321 = vld [vmem:[#allocation7 + $0x24] sm:$0xf]
    %v322 = vld [vmem:[#allocation7 + $0x28] sm:$0xf]
    %v323 = vld [vmem:[#allocation7 + $0x2c] sm:$0xf]
    %v324 = vld [vmem:[#allocation7 + $0x30] sm:$0xf]
    %v325 = vld [vmem:[#allocation7 + $0x34] sm:$0xf]
    %v326 = vld [vmem:[#allocation7 + $0x38] sm:$0xf]
    %v327 = vld [vmem:[#allocation7 + $0x3c] sm:$0xf]
    %v328 = vlaneseq
    %v329 = vshrl.u32 %v328, 7
    %v330 = vsub.s32 0, %v329
    %v331 = vrot.slane %v69, %v330
    %v348 = vunpack.c.l.b16 %v312
    %v349 = vunpack.c.l.b16 %v313
    %v350 = vunpack.c.l.b16 %v314
    %v351 = vunpack.c.l.b16 %v315
    %v352 = vunpack.c.l.b16 %v316
    %v353 = vunpack.c.l.b16 %v317
    %v354 = vunpack.c.l.b16 %v318
    %v355 = vunpack.c.l.b16 %v319
    %v356 = vunpack.c.l.b16 %v320
    %v357 = vunpack.c.l.b16 %v321
    %v358 = vunpack.c.l.b16 %v322
    %v359 = vunpack.c.l.b16 %v323
    %v360 = vunpack.c.l.b16 %v324
    %v361 = vunpack.c.l.b16 %v325
    %v362 = vunpack.c.l.b16 %v326
    %v363 = vunpack.c.l.b16 %v327
    %v364 = vpack.c.b16 %v349, %v348
    %v365 = vpack.c.b16 %v351, %v350
    %v366 = vpack.c.b16 %v353, %v352
    %v367 = vpack.c.b16 %v355, %v354
    %v368 = vpack.c.b16 %v357, %v356
    %v369 = vpack.c.b16 %v359, %v358
    %v370 = vpack.c.b16 %v361, %v360
    %v371 = vpack.c.b16 %v363, %v362
    %380 = vmatprep.subr.bf16.mxu0 0
    %381 = vmatpush1.bf16.msra.mxu0 %v364
    %382 = vmatprep.subr.bf16.mxu0 0
    %383 = vmatpush1.bf16.msra.mxu0 %v365
    %384 = vmatprep.subr.bf16.mxu0 0
    %385 = vmatpush1.bf16.msra.mxu0 %v366
    %386 = vmatprep.subr.bf16.mxu0 0
    %387 = vmatpush1.bf16.msra.mxu0 %v367
    %388 = vmatprep.subr.bf16.mxu0 0
    %389 = vmatpush1.bf16.msra.mxu0 %v368
    %390 = vmatprep.subr.bf16.mxu0 0
    %391 = vmatpush1.bf16.msra.mxu0 %v369
    %392 = vmatprep.subr.bf16.mxu0 0
    %393 = vmatpush1.bf16.msra.mxu0 %v370
    %394 = vmatprep.subr.bf16.mxu0 0
    %395 = vmatpush1.bf16.msra.mxu0 %v371
    %396 = vmatprep.subr.bf16.mxu0 0
    %397 = vmatpush1.bf16.msra.mxu0 0
    %398 = vmatprep.subr.bf16.mxu0 0
    %399 = vmatpush1.bf16.msra.mxu0 0
    %400 = vmatprep.subr.bf16.mxu0 0
    %401 = vmatpush1.bf16.msra.mxu0 0
    %402 = vmatprep.subr.bf16.mxu0 0
    %403 = vmatpush1.bf16.msra.mxu0 0
    %404 = vmatprep.subr.bf16.mxu0 0
    %405 = vmatpush1.bf16.msra.mxu0 0
    %406 = vmatprep.subr.bf16.mxu0 0
    %407 = vmatpush1.bf16.msra.mxu0 0
    %408 = vmatprep.subr.bf16.mxu0 0
    %409 = vmatpush1.bf16.msra.mxu0 0
    %410 = vmatprep.subr.bf16.mxu0 0
    %411 = vmatpush1.bf16.msra.mxu0 0
    %412 = vmatprep.mubr.bf16.mxu0 0
    %413 = vmatmul.mubr.bf16.gmra.mrb[0].mxu0 %v311
    %v414 = vpop.f32.mrb[0].mxu0
    %v415 = vadd.f32 %v331, %v414
    %v416 = vpop.f32.mrb[0].mxu0
    %v417 = vpop.f32.mrb[0].mxu0
    %v418 = vpop.f32.mrb[0].mxu0
    %419 = vdwg.mxu0
    %vm420 = vcmask 261120
    %421 = vst.msk [vmem:[#allocation8] sm:$0xff] %vm420, %v415
    // Predicated region
    $region38: #{tpu_custom_call.1} parent=1 // pred_check
      _
    $region39: #{tpu_custom_call.1} parent=1 // pred_check_branch
      %423 = sbr.rel (0) target = $region41
    $region40: #{tpu_custom_call.1} parent=1 // pred_region
      %s425 = ssub.s32 128, 128
      %426 = vsyncadd [#allocation4], %s425
      %s428 = sshll.u32 [#allocation8], 4
      %s429 = int_to_ptr.vmem [resolvable:$true] %s428
      %431 = dma.vmem_to_hbm [thread:$0]  %s429, 128, %s6, [#allocation4]
    $region41: #{tpu_custom_call.1} parent=1 // pred_fallthru
      _
    // Predicated region
    $region42: #{tpu_custom_call.1} parent=1 // pred_check
      _
    $region43: #{tpu_custom_call.1} parent=1 // pred_check_branch
      %433 = sbr.rel (0) target = $region45
    $region44: #{tpu_custom_call.1} parent=1 // pred_region
      %434 = dma.done [#allocation4], 128
    $region45: #{tpu_custom_call.1} parent=1 // pred_fallthru
      _
    %435 = vsyncpa [#allocation3], 1
    %436 = vsyncpa [#allocation6], 1
    %437 = vsyncpa [#allocation4], 1

</llo_original>
